<compile_context>
chip_gen: v6e
topology: v6e:2x2x1
jax: 0.10.0
libtpu: 0.0.40
codegen_flags: <defaults>
</compile_context>

<pallas_src>
import functools

import jax
import jax.numpy as jnp
import numpy as np
from jax import lax
from jax.experimental import pallas as pl
from jax.experimental.pallas import tpu as pltpu

_LANES = 128
_NEG_INF = float("-inf")


def _round_up(n, m):
    return ((n + m - 1) // m) * m


def _meta_model_kernel(xa_ref,
                       w1_ref, b1_ref,
                       w2_ref, b2_ref,
                       w3_ref, b3_ref,
                       adj_ref,
                       o_ref,
                       *, out_size, feat):
    """Fused MLP + LeakyReLU + softmax + meta-adjustment + softmax.

    xa_ref : (tile_b, feat+1)  -- features with the task id folded into the
                                  last column (as f32); w1 has a zero row for it.
    adj_ref: (nt_pad, o_pad)   -- mesa_params @ meta_w, zero-padded.
    o_ref  : (tile_b, out_size)
    """
    o_pad = w3_ref.shape[1]
    nt_pad = adj_ref.shape[0]

    xa = xa_ref[...]

    # base_model: Linear -> LeakyReLU -> (Dropout=id) -> Linear -> LeakyReLU
    #             -> (Dropout=id) -> Linear   (weights stored as (in, out) = W.T)
    h = jnp.dot(xa, w1_ref[...], preferred_element_type=jnp.float32) + b1_ref[...]
    h = jnp.where(h > 0, h, 0.01 * h)                       # LeakyReLU(0.01)

    h = jnp.dot(h, w2_ref[...], preferred_element_type=jnp.float32) + b2_ref[...]
    h = jnp.where(h > 0, h, 0.01 * h)

    logits = jnp.dot(h, w3_ref[...], preferred_element_type=jnp.float32) + b3_ref[...]

    # 1-row lane mask for the zero-padded head columns (broadcasts over rows).
    col = lax.broadcasted_iota(jnp.int32, (1, o_pad), 1)
    valid = col < out_size

    # softmax #1 over the valid columns (padded cols -> exactly 0).
    logits = jnp.where(valid, logits, _NEG_INF)
    m1 = jnp.max(logits, axis=1, keepdims=True)
    e1 = jnp.exp(logits - m1)
    base_pred = e1 * pl.reciprocal(jnp.sum(e1, axis=1, keepdims=True), approx=True)

    # In-kernel mesa gather: one_hot(task_id) @ adj_table.  The task id sits in
    # column `feat` of xa (exact small integers in f32).
    tid = xa[:, feat:feat + 1].astype(jnp.int32)            # (tile_b, 1)
    tvals = lax.broadcasted_iota(jnp.int32, (1, nt_pad), 1)  # (1, nt_pad)
    one_hot = (tvals == tid).astype(jnp.float32)             # (tile_b, nt_pad)
    adj = jnp.dot(one_hot, adj_ref[...], preferred_element_type=jnp.float32)

    # softmax #2 (final) -- exact normalization so rows sum to 1.
    z = jnp.where(valid, base_pred + adj, _NEG_INF)
    m2 = jnp.max(z, axis=1, keepdims=True)
    e2 = jnp.exp(z - m2)
    out = e2 / jnp.sum(e2, axis=1, keepdims=True)

    # Store only the real columns -- the HBM output is (B, out_size), not 128-wide.
    o_ref[...] = out[:, :out_size].astype(o_ref.dtype)


def meta_model_forward(x, task_indices, params, *, tile_b=None):
    """Runs the fused Pallas kernel.  Weights are stored as (in, out) = PyTorch W.T."""
    x = jnp.asarray(x, jnp.float32)
    task_indices = jnp.asarray(task_indices, jnp.int32)
    B, F = x.shape

    w1, b1 = params["w1"], params["b1"]
    w2, b2 = params["w2"], params["b2"]
    w3, b3 = params["w3"], params["b3"]
    wm = params["meta_w"]                 # (mesa_dim, output_size) == PyTorch W.T
    mesa = params["mesa_params"]          # (num_tasks, mesa_dim)

    H1 = w1.shape[1]
    H2 = w2.shape[1]
    O = w3.shape[1]
    num_tasks = mesa.shape[0]

    # ---- fold the task id into x as one extra f32 column -------------------------
    # (x is lane-padded 32 -> 128 in VMEM anyway, so the extra column is free there;
    #  this removes a separate (tile_b, 1) int32 input stream that lane-padded 1->128.)
    xa = jnp.concatenate([x, task_indices.astype(jnp.float32).reshape(B, 1)], axis=1)
    Fe = F + 1
    # w1 gains a zero row so the task-id column never affects the MLP.
    w1p = jnp.concatenate([w1, jnp.zeros((1, H1), jnp.float32)], axis=0)

    # ---- head: compute on 128 padded lanes, but keep padding out of HBM ----------
    o_pad = max(_LANES, _round_up(O, _LANES))
    w3p = jnp.zeros((H2, o_pad), jnp.float32).at[:, :O].set(w3)
    b3p = jnp.zeros((1, o_pad), jnp.float32).at[0, :O].set(b3)

    # ---- fold mesa_params @ meta_w into a tiny adjustment table ------------------
    nt_pad = max(8, _round_up(num_tasks, 8))
    adj_table = jnp.zeros((nt_pad, o_pad), jnp.float32).at[:num_tasks, :O].set(mesa @ wm)

    b1r = b1.reshape(1, H1)
    b2r = b2.reshape(1, H2)

    # ---- batch tiling (no wrapper padding; ragged tail handled by Pallas) --------
    if tile_b is None:
        if B <= 512:
            tile_b = _round_up(B, 8)                       # one tile
        else:
            # >= 2 grid steps so both v7x TensorCores get work; cap at 4096 rows so
            # v5e/v6e amortize step overhead with comfortable VMEM headroom.
            tile_b = min(4096, _round_up(pl.cdiv(B, 2), 8))
    tile_b = max(8, _round_up(int(tile_b), 8))
    grid = (pl.cdiv(B, tile_b),)

    grid_spec = pl.GridSpec(
        grid=grid,
        in_specs=[
            pl.BlockSpec((tile_b, Fe), lambda i: (i, 0)),         # x + task-id column
            pl.BlockSpec((Fe, H1), lambda i: (0, 0)),             # w1 (full, resident)
            pl.BlockSpec((1, H1), lambda i: (0, 0)),              # b1
            pl.BlockSpec((H1, H2), lambda i: (0, 0)),             # w2
            pl.BlockSpec((1, H2), lambda i: (0, 0)),              # b2
            pl.BlockSpec((H2, o_pad), lambda i: (0, 0)),          # w3 (lane-padded)
            pl.BlockSpec((1, o_pad), lambda i: (0, 0)),           # b3 (lane-padded)
            pl.BlockSpec((nt_pad, o_pad), lambda i: (0, 0)),      # adjustment table
        ],
        out_specs=pl.BlockSpec((tile_b, O), lambda i: (i, 0)),    # narrow HBM output
    )

    out = pl.pallas_call(
        functools.partial(_meta_model_kernel, out_size=O, feat=F),
        out_shape=jax.ShapeDtypeStruct((B, O), jnp.float32),
        grid_spec=grid_spec,
        compiler_params=pltpu.CompilerParams(
            dimension_semantics=("parallel",)),
    )(xa, w1p, b1r, w2, b2r, w3p, b3p, adj_table)

    return out


def _reference_forward(x, task_indices, params):
    """Pure-JAX reference replicating the PyTorch forward (eval mode)."""
    h = x @ params["w1"] + params["b1"]
    h = jnp.where(h > 0, h, 0.01 * h)
    h = h @ params["w2"] + params["b2"]
    h = jnp.where(h > 0, h, 0.01 * h)
    logits = h @ params["w3"] + params["b3"]
    base_pred = jax.nn.softmax(logits, axis=1)
    adj = params["mesa_params"][task_indices] @ params["meta_w"]
    return jax.nn.softmax(base_pred + adj, axis=1)


def init_params(key, input_size, hidden_sizes, output_size, num_tasks, mesa_dim):
    """Deterministic synthetic init (shapes from ModelConfig / MetaModel.__init__)."""
    ks = jax.random.split(key, 8)
    h1, h2 = hidden_sizes
    scale = 0.1
    return {
        "w1": scale * jax.random.normal(ks[0], (input_size, h1), jnp.float32),
        "b1": scale * jax.random.normal(ks[1], (h1,), jnp.float32),
        "w2": scale * jax.random.normal(ks[2], (h1, h2), jnp.float32),
        "b2": scale * jax.random.normal(ks[3], (h2,), jnp.float32),
        "w3": scale * jax.random.normal(ks[4], (h2, output_size), jnp.float32),
        "b3": scale * jax.random.normal(ks[5], (output_size,), jnp.float32),
        # mesa_params ~ torch.randn(num_tasks, mesa_dim)
        "mesa_params": jax.random.normal(ks[6], (num_tasks, mesa_dim), jnp.float32),
        # meta_layer: Linear(mesa_dim, output_size, bias=False), stored transposed
        "meta_w": scale * jax.random.normal(ks[7], (mesa_dim, output_size), jnp.float32),
    }


if __name__ == "__main__":
    # Small config consistent with the module:
    #   input_size=32, hidden_sizes=[32, 32], output_size=5, mesa_dim=1, num_tasks=4
    B, F = 64, 32
    HIDDEN = [32, 32]
    OUT = 5
    NUM_TASKS = 4
    MESA_DIM = 1

    key = jax.random.PRNGKey(0)
    k_params, k_x = jax.random.split(key)
    params = init_params(k_params, F, HIDDEN, OUT, NUM_TASKS, MESA_DIM)

    x = jax.random.normal(k_x, (B, F), jnp.float32)
    task_indices = jnp.arange(B, dtype=jnp.int32) % NUM_TASKS

    out = meta_model_forward(x, task_indices, params)
    out = jax.block_until_ready(out)

    ref = _reference_forward(x, task_indices, params)
    # approx=True reciprocal only in the intermediate softmax -> tight-ish tolerance.
    np.testing.assert_allclose(np.asarray(out), np.asarray(ref), rtol=2e-3, atol=2e-3)
    # Final normalization is exact: rows sum to 1.
    np.testing.assert_allclose(np.asarray(out).sum(axis=1), np.ones(B), rtol=1e-5, atol=1e-5)

    print("KERNEL_OK")
</pallas_src>

<mosaic_0001>
module attributes {stable_mosaic.version = 11 : i64} {
  func.func @_meta_model_kernel(%arg0: i32, %arg1: memref<64x33xf32, #tpu.memory_space<vmem>>, %arg2: memref<33x32xf32, #tpu.memory_space<vmem>>, %arg3: memref<1x32xf32, #tpu.memory_space<vmem>>, %arg4: memref<32x32xf32, #tpu.memory_space<vmem>>, %arg5: memref<1x32xf32, #tpu.memory_space<vmem>>, %arg6: memref<32x128xf32, #tpu.memory_space<vmem>>, %arg7: memref<1x128xf32, #tpu.memory_space<vmem>>, %arg8: memref<8x128xf32, #tpu.memory_space<vmem>>, %arg9: memref<64x5xf32, #tpu.memory_space<vmem>>) attributes {dimension_semantics = [#tpu.dimension_semantics<parallel>], iteration_bounds = array<i64: 1>, scalar_prefetch = 0 : i64, scratch_operands = 0 : i64, tpu.core_type = #tpu.core_type<tc>, window_params = [{transform_indices = @transform_0, window_bounds = array<i64: 64, 33>}, {pipeline_mode = #tpu.pipeline_mode<synchronous>, transform_indices = @transform_1, window_bounds = array<i64: 33, 32>}, {pipeline_mode = #tpu.pipeline_mode<synchronous>, transform_indices = @transform_2, window_bounds = array<i64: 1, 32>}, {pipeline_mode = #tpu.pipeline_mode<synchronous>, transform_indices = @transform_3, window_bounds = array<i64: 32, 32>}, {pipeline_mode = #tpu.pipeline_mode<synchronous>, transform_indices = @transform_4, window_bounds = array<i64: 1, 32>}, {pipeline_mode = #tpu.pipeline_mode<synchronous>, transform_indices = @transform_5, window_bounds = array<i64: 32, 128>}, {pipeline_mode = #tpu.pipeline_mode<synchronous>, transform_indices = @transform_6, window_bounds = array<i64: 1, 128>}, {pipeline_mode = #tpu.pipeline_mode<synchronous>, transform_indices = @transform_7, window_bounds = array<i64: 8, 128>}, {transform_indices = @transform_8, window_bounds = array<i64: 64, 5>}]} {
    %c0 = arith.constant 0 : index
    %c0_0 = arith.constant 0 : index
    %0 = vector.load %arg1[%c0, %c0_0] : memref<64x33xf32, #tpu.memory_space<vmem>>, vector<64x33xf32>
    %c0_1 = arith.constant 0 : index
    %c0_2 = arith.constant 0 : index
    %1 = vector.load %arg2[%c0_1, %c0_2] : memref<33x32xf32, #tpu.memory_space<vmem>>, vector<33x32xf32>
    %cst = arith.constant dense<0.000000e+00> : vector<64x32xf32>
    %2 = tpu.matmul %0, %1, %cst {dimension_numbers = #tpu.dot_dimension_numbers<[1], [0], [0], [1], [0, 0, 1, 1], [], []>} : vector<64x33xf32>, vector<33x32xf32>, vector<64x32xf32> -> vector<64x32xf32>
    %c0_3 = arith.constant 0 : index
    %c0_4 = arith.constant 0 : index
    %3 = vector.load %arg3[%c0_3, %c0_4] : memref<1x32xf32, #tpu.memory_space<vmem>>, vector<1x32xf32>
    %4 = vector.broadcast %3 : vector<1x32xf32> to vector<64x32xf32>
    %5 = arith.addf %2, %4 : vector<64x32xf32>
    %cst_5 = arith.constant 0.000000e+00 : f32
    %6 = vector.broadcast %cst_5 : f32 to vector<64x32xf32>
    %7 = arith.cmpf ogt, %5, %6 : vector<64x32xf32>
    %cst_6 = arith.constant 0.00999999977 : f32
    %8 = vector.broadcast %cst_6 : f32 to vector<64x32xf32>
    %9 = arith.mulf %8, %5 : vector<64x32xf32>
    %10 = arith.select %7, %5, %9 : vector<64x32xi1>, vector<64x32xf32>
    %c0_7 = arith.constant 0 : index
    %c0_8 = arith.constant 0 : index
    %11 = vector.load %arg4[%c0_7, %c0_8] : memref<32x32xf32, #tpu.memory_space<vmem>>, vector<32x32xf32>
    %cst_9 = arith.constant dense<0.000000e+00> : vector<64x32xf32>
    %12 = tpu.matmul %10, %11, %cst_9 {dimension_numbers = #tpu.dot_dimension_numbers<[1], [0], [0], [1], [0, 0, 1, 1], [], []>} : vector<64x32xf32>, vector<32x32xf32>, vector<64x32xf32> -> vector<64x32xf32>
    %c0_10 = arith.constant 0 : index
    %c0_11 = arith.constant 0 : index
    %13 = vector.load %arg5[%c0_10, %c0_11] : memref<1x32xf32, #tpu.memory_space<vmem>>, vector<1x32xf32>
    %14 = vector.broadcast %13 : vector<1x32xf32> to vector<64x32xf32>
    %15 = arith.addf %12, %14 : vector<64x32xf32>
    %cst_12 = arith.constant 0.000000e+00 : f32
    %16 = vector.broadcast %cst_12 : f32 to vector<64x32xf32>
    %17 = arith.cmpf ogt, %15, %16 : vector<64x32xf32>
    %cst_13 = arith.constant 0.00999999977 : f32
    %18 = vector.broadcast %cst_13 : f32 to vector<64x32xf32>
    %19 = arith.mulf %18, %15 : vector<64x32xf32>
    %20 = arith.select %17, %15, %19 : vector<64x32xi1>, vector<64x32xf32>
    %c0_14 = arith.constant 0 : index
    %c0_15 = arith.constant 0 : index
    %21 = vector.load %arg6[%c0_14, %c0_15] : memref<32x128xf32, #tpu.memory_space<vmem>>, vector<32x128xf32>
    %cst_16 = arith.constant dense<0.000000e+00> : vector<64x128xf32>
    %22 = tpu.matmul %20, %21, %cst_16 {dimension_numbers = #tpu.dot_dimension_numbers<[1], [0], [0], [1], [0, 0, 1, 1], [], []>} : vector<64x32xf32>, vector<32x128xf32>, vector<64x128xf32> -> vector<64x128xf32>
    %c0_17 = arith.constant 0 : index
    %c0_18 = arith.constant 0 : index
    %23 = vector.load %arg7[%c0_17, %c0_18] : memref<1x128xf32, #tpu.memory_space<vmem>>, vector<1x128xf32>
    %24 = vector.broadcast %23 : vector<1x128xf32> to vector<64x128xf32>
    %25 = arith.addf %22, %24 : vector<64x128xf32>
    %26 = tpu.iota {dimensions = array<i32: 1>} : vector<1x128xi32>
    %c5_i32 = arith.constant 5 : i32
    %27 = vector.broadcast %c5_i32 : i32 to vector<1x128xi32>
    %28 = arith.cmpi slt, %26, %27 : vector<1x128xi32>
    %cst_19 = arith.constant 0xFF800000 : f32
    %29 = vector.shape_cast %28 : vector<1x128xi1> to vector<1x128xi1>
    %30 = vector.broadcast %29 : vector<1x128xi1> to vector<64x128xi1>
    %31 = vector.broadcast %cst_19 : f32 to vector<64x128xf32>
    %32 = arith.select %30, %25, %31 : vector<64x128xi1>, vector<64x128xf32>
    %cst_20 = arith.constant dense<0xFF800000> : vector<64xf32>
    %33 = vector.multi_reduction <maximumf>, %32, %cst_20 [1] : vector<64x128xf32> to vector<64xf32>
    %34 = vector.shape_cast %33 : vector<64xf32> to vector<64x1xf32>
    %35 = vector.broadcast %34 : vector<64x1xf32> to vector<64x128xf32>
    %36 = arith.subf %32, %35 : vector<64x128xf32>
    %37 = math.exp %36 : vector<64x128xf32>
    %cst_21 = arith.constant dense<0.000000e+00> : vector<64xf32>
    %38 = vector.multi_reduction <add>, %37, %cst_21 [1] : vector<64x128xf32> to vector<64xf32>
    %39 = vector.shape_cast %38 : vector<64xf32> to vector<64x1xf32>
    %40 = tpu.reciprocal %39 {approx = true} : vector<64x1xf32> -> vector<64x1xf32>
    %41 = vector.broadcast %40 : vector<64x1xf32> to vector<64x128xf32>
    %42 = arith.mulf %37, %41 : vector<64x128xf32>
    %43 = vector.extract_strided_slice %0 {offsets = [0, 32], sizes = [64, 1], strides = [1, 1]} : vector<64x33xf32> to vector<64x1xf32>
    %44 = arith.fptosi %43 : vector<64x1xf32> to vector<64x1xi32>
    %45 = tpu.iota {dimensions = array<i32: 1>} : vector<1x8xi32>
    %46 = vector.broadcast %45 : vector<1x8xi32> to vector<64x8xi32>
    %47 = vector.broadcast %44 : vector<64x1xi32> to vector<64x8xi32>
    %48 = arith.cmpi eq, %46, %47 : vector<64x8xi32>
    %49 = arith.extui %48 : vector<64x8xi1> to vector<64x8xi32>
    %50 = arith.sitofp %49 : vector<64x8xi32> to vector<64x8xf32>
    %c0_22 = arith.constant 0 : index
    %c0_23 = arith.constant 0 : index
    %51 = vector.load %arg8[%c0_22, %c0_23] : memref<8x128xf32, #tpu.memory_space<vmem>>, vector<8x128xf32>
    %cst_24 = arith.constant dense<0.000000e+00> : vector<64x128xf32>
    %52 = tpu.matmul %50, %51, %cst_24 {dimension_numbers = #tpu.dot_dimension_numbers<[1], [0], [0], [1], [0, 0, 1, 1], [], []>} : vector<64x8xf32>, vector<8x128xf32>, vector<64x128xf32> -> vector<64x128xf32>
    %53 = arith.addf %42, %52 : vector<64x128xf32>
    %cst_25 = arith.constant 0xFF800000 : f32
    %54 = vector.shape_cast %28 : vector<1x128xi1> to vector<1x128xi1>
    %55 = vector.broadcast %54 : vector<1x128xi1> to vector<64x128xi1>
    %56 = vector.broadcast %cst_25 : f32 to vector<64x128xf32>
    %57 = arith.select %55, %53, %56 : vector<64x128xi1>, vector<64x128xf32>
    %cst_26 = arith.constant dense<0xFF800000> : vector<64xf32>
    %58 = vector.multi_reduction <maximumf>, %57, %cst_26 [1] : vector<64x128xf32> to vector<64xf32>
    %59 = vector.shape_cast %58 : vector<64xf32> to vector<64x1xf32>
    %60 = vector.broadcast %59 : vector<64x1xf32> to vector<64x128xf32>
    %61 = arith.subf %57, %60 : vector<64x128xf32>
    %62 = math.exp %61 : vector<64x128xf32>
    %cst_27 = arith.constant dense<0.000000e+00> : vector<64xf32>
    %63 = vector.multi_reduction <add>, %62, %cst_27 [1] : vector<64x128xf32> to vector<64xf32>
    %64 = vector.shape_cast %63 : vector<64xf32> to vector<64x1xf32>
    %65 = vector.broadcast %64 : vector<64x1xf32> to vector<64x128xf32>
    %66 = arith.divf %62, %65 : vector<64x128xf32>
    %67 = vector.extract_strided_slice %66 {offsets = [0, 0], sizes = [64, 5], strides = [1, 1]} : vector<64x128xf32> to vector<64x5xf32>
    %c0_28 = arith.constant 0 : index
    %c0_29 = arith.constant 0 : index
    %68 = vector.load %arg9[%c0_28, %c0_29] : memref<64x5xf32, #tpu.memory_space<vmem>>, vector<64x5xf32>
    tpu.vector_store %arg9[%c0_28, %c0_29], %67 {strides = array<i32>} : memref<64x5xf32, #tpu.memory_space<vmem>>, vector<64x5xf32>,
    return
  }
  func.func @transform_0(%arg0: i32) -> (i32, i32) {
    %c0_i32 = arith.constant 0 : i32
    %c0_i32_0 = arith.constant 0 : i32
    return %arg0, %c0_i32 : i32, i32
  }
  func.func @transform_1(%arg0: i32) -> (i32, i32) {
    %c0_i32 = arith.constant 0 : i32
    %c0_i32_0 = arith.constant 0 : i32
    %c0_i32_1 = arith.constant 0 : i32
    return %c0_i32, %c0_i32_0 : i32, i32
  }
  func.func @transform_2(%arg0: i32) -> (i32, i32) {
    %c0_i32 = arith.constant 0 : i32
    %c0_i32_0 = arith.constant 0 : i32
    %c0_i32_1 = arith.constant 0 : i32
    return %c0_i32, %c0_i32_0 : i32, i32
  }
  func.func @transform_3(%arg0: i32) -> (i32, i32) {
    %c0_i32 = arith.constant 0 : i32
    %c0_i32_0 = arith.constant 0 : i32
    %c0_i32_1 = arith.constant 0 : i32
    return %c0_i32, %c0_i32_0 : i32, i32
  }
  func.func @transform_4(%arg0: i32) -> (i32, i32) {
    %c0_i32 = arith.constant 0 : i32
    %c0_i32_0 = arith.constant 0 : i32
    %c0_i32_1 = arith.constant 0 : i32
    return %c0_i32, %c0_i32_0 : i32, i32
  }
  func.func @transform_5(%arg0: i32) -> (i32, i32) {
    %c0_i32 = arith.constant 0 : i32
    %c0_i32_0 = arith.constant 0 : i32
    %c0_i32_1 = arith.constant 0 : i32
    return %c0_i32, %c0_i32_0 : i32, i32
  }
  func.func @transform_6(%arg0: i32) -> (i32, i32) {
    %c0_i32 = arith.constant 0 : i32
    %c0_i32_0 = arith.constant 0 : i32
    %c0_i32_1 = arith.constant 0 : i32
    return %c0_i32, %c0_i32_0 : i32, i32
  }
  func.func @transform_7(%arg0: i32) -> (i32, i32) {
    %c0_i32 = arith.constant 0 : i32
    %c0_i32_0 = arith.constant 0 : i32
    %c0_i32_1 = arith.constant 0 : i32
    return %c0_i32, %c0_i32_0 : i32, i32
  }
  func.func @transform_8(%arg0: i32) -> (i32, i32) {
    %c0_i32 = arith.constant 0 : i32
    %c0_i32_0 = arith.constant 0 : i32
    return %arg0, %c0_i32 : i32, i32
  }
}

</mosaic_0001>

<llo_original>
// kernel: tpu_custom_call.1
$region0: #{tpu_custom_call.1}
  #allocation0 [shape = 'u32[]', space=smem, size = 0x4, offset = 0x4, fixed_abs, tag = 'smem constant byte address 0x4 - core index']
  #allocation1 [shape = 'u32[144,128]{1,0:T(1,128)}', space=vmem, size = 0x12000, scoped, tag = 'internal scratch']
  %s0 = inlined_call_operand.vmem [shape: f32[64,33], index: 0, kind: input, shape index: {}]
  %s1 = inlined_call_operand.vmem [shape: f32[33,32], index: 1, kind: input, shape index: {}]
  %s2 = inlined_call_operand.vmem [shape: f32[1,32], index: 2, kind: input, shape index: {}]
  %s3 = inlined_call_operand.vmem [shape: f32[32,32], index: 3, kind: input, shape index: {}]
  %s4 = inlined_call_operand.vmem [shape: f32[1,32], index: 4, kind: input, shape index: {}]
  %s5 = inlined_call_operand.vmem [shape: f32[32,128], index: 5, kind: input, shape index: {}]
  %s6 = inlined_call_operand.vmem [shape: f32[1,128], index: 6, kind: input, shape index: {}]
  %s7 = inlined_call_operand.vmem [shape: f32[8,128], index: 7, kind: input, shape index: {}]
  %s8 = inlined_call_operand.vmem [shape: f32[64,5], index: 8, kind: output, shape index: {}]
  %s9 = sld [smem:[#allocation0]]
  $region42: #{tpu_custom_call.1} parent=0
    _
  %s11 = ssub.s32 1, %s9
  %s12 = scalar_select 0, %s11, %s9
  // Predicated region
  $region2: #{tpu_custom_call.1} parent=0 // pred_check
    _
  $region3: #{tpu_custom_call.1} parent=0 // pred_check_branch
    %14 = sbr.rel (0) target = $region5
  $region4: #{tpu_custom_call.1} parent=0 // pred_region
    _
  $region5: #{tpu_custom_call.1} parent=0 // pred_fallthru
    _
  // Predicated region
  $region6: #{tpu_custom_call.1} parent=0 // pred_check
    _
  $region7: #{tpu_custom_call.1} parent=0 // pred_check_branch
    %16 = sbr.rel (0) target = $region9
  $region8: #{tpu_custom_call.1} parent=0 // pred_region
    _
  $region9: #{tpu_custom_call.1} parent=0 // pred_fallthru
    _
  // Predicated region
  $region10: #{tpu_custom_call.1} parent=0 // pred_check
    _
  $region11: #{tpu_custom_call.1} parent=0 // pred_check_branch
    %18 = sbr.rel (0) target = $region13
  $region12: #{tpu_custom_call.1} parent=0 // pred_region
    _
  $region13: #{tpu_custom_call.1} parent=0 // pred_fallthru
    _
  // Predicated region
  $region14: #{tpu_custom_call.1} parent=0 // pred_check
    _
  $region15: #{tpu_custom_call.1} parent=0 // pred_check_branch
    %20 = sbr.rel (0) target = $region17
  $region16: #{tpu_custom_call.1} parent=0 // pred_region
    _
  $region17: #{tpu_custom_call.1} parent=0 // pred_fallthru
    _
  // Predicated region
  $region18: #{tpu_custom_call.1} parent=0 // pred_check
    _
  $region19: #{tpu_custom_call.1} parent=0 // pred_check_branch
    %22 = sbr.rel (0) target = $region21
  $region20: #{tpu_custom_call.1} parent=0 // pred_region
    _
  $region21: #{tpu_custom_call.1} parent=0 // pred_fallthru
    _
  // Predicated region
  $region22: #{tpu_custom_call.1} parent=0 // pred_check
    _
  $region23: #{tpu_custom_call.1} parent=0 // pred_check_branch
    %24 = sbr.rel (0) target = $region25
  $region24: #{tpu_custom_call.1} parent=0 // pred_region
    _
  $region25: #{tpu_custom_call.1} parent=0 // pred_fallthru
    _
  // Predicated region
  $region26: #{tpu_custom_call.1} parent=0 // pred_check
    _
  $region27: #{tpu_custom_call.1} parent=0 // pred_check_branch
    %26 = sbr.rel (0) target = $region29
  $region28: #{tpu_custom_call.1} parent=0 // pred_region
    _
  $region29: #{tpu_custom_call.1} parent=0 // pred_fallthru
    _
  // Predicated region
  $region30: #{tpu_custom_call.1} parent=0 // pred_check
    _
  $region31: #{tpu_custom_call.1} parent=0 // pred_check_branch
    %28 = sbr.rel (0) target = $region33
  $region32: #{tpu_custom_call.1} parent=0 // pred_region
    _
  $region33: #{tpu_custom_call.1} parent=0 // pred_fallthru
    _
  %v29 = vld [vmem:[%s0] sm:$0xff]
  %v30 = vld [vmem:[%s0 + $0x8] sm:$0xff]
  %v31 = vld [vmem:[%s0 + $0x10] sm:$0xff]
  %v32 = vld [vmem:[%s0 + $0x18] sm:$0xff]
  %v33 = vld [vmem:[%s0 + $0x20] sm:$0xff]
  %v34 = vld [vmem:[%s0 + $0x28] sm:$0xff]
  %v35 = vld [vmem:[%s0 + $0x30] sm:$0xff]
  %v36 = vld [vmem:[%s0 + $0x38] sm:$0xff]
  %v37 = vld [vmem:[%s1] sm:$0xff]
  %v38 = vld [vmem:[%s1 + $0x8] sm:$0xff]
  %v39 = vld [vmem:[%s1 + $0x10] sm:$0xff]
  %v40 = vld [vmem:[%s1 + $0x18] sm:$0xff]
  %v41 = vld [vmem:[%s1 + $0x20] sm:$0x1]
  %v42 = vld [vmem:[%s2] sm:$0x1]
  %v44 = vlaneseq
  %v45 = vshrl.u32 %v44, 7
  %v46 = vsub.s32 0, %v45
  %v47 = vrot.slane %v42, %v46
  %vm49 = vcmask 269312
  %v51 = vsel %vm49, %v29, 0
  %v54 = vsel %vm49, %v30, 0
  %v57 = vsel %vm49, %v31, 0
  %v60 = vsel %vm49, %v32, 0
  %v63 = vsel %vm49, %v33, 0
  %v66 = vsel %vm49, %v34, 0
  %v69 = vsel %vm49, %v35, 0
  %v72 = vsel %vm49, %v36, 0
  %vm74 = vcmask 1040384
  %v76 = vsel %vm74, %v41, 0
  %78 = vmatprep.subr.mxu0 0.0
  %79 = vmatpush1.msra.mxu0 0.0
  %80 = vmatprep.subr.mxu0 0.0
  %81 = vmatpush1.msra.mxu0 0.0
  %82 = vmatprep.subr.mxu0 0.0
  %83 = vmatpush1.msra.mxu0 0.0
  %84 = vmatprep.subr.mxu0 0.0
  %85 = vmatpush1.msra.mxu0 0.0
  %86 = vmatprep.subr.mxu0 0.0
  %87 = vmatpush1.msra.mxu0 0.0
  %88 = vmatprep.subr.mxu0 0.0
  %89 = vmatpush1.msra.mxu0 0.0
  %90 = vmatprep.subr.mxu0 0.0
  %91 = vmatpush1.msra.mxu0 0.0
  %92 = vmatprep.subr.mxu0 0.0
  %93 = vmatpush1.msra.mxu0 0.0
  %94 = vmatprep.subr.mxu0 0.0
  %95 = vmatpush1.msra.mxu0 0.0
  %96 = vmatprep.subr.mxu0 0.0
  %97 = vmatpush1.msra.mxu0 0.0
  %98 = vmatprep.subr.mxu0 0.0
  %99 = vmatpush1.msra.mxu0 0.0
  %100 = vmatprep.subr.mxu0 0.0
  %101 = vmatpush1.msra.mxu0 %v76
  %102 = vmatprep.subr.mxu0 0.0
  %103 = vmatpush1.msra.mxu0 %v40
  %104 = vmatprep.subr.mxu0 0.0
  %105 = vmatpush1.msra.mxu0 %v39
  %106 = vmatprep.subr.mxu0 0.0
  %107 = vmatpush1.msra.mxu0 %v38
  %108 = vmatprep.subr.mxu0 0.0
  %109 = vmatpush1.msra.mxu0 %v37
  %110 = vmatprep.subr.mxu0 0.0
  %111 = vmatpush2.msra.mxu0 0.0
  %112 = vmatprep.subr.mxu0 0.0
  %113 = vmatpush2.msra.mxu0 0.0
  %114 = vmatprep.subr.mxu0 0.0
  %115 = vmatpush2.msra.mxu0 0.0
  %116 = vmatprep.subr.mxu0 0.0
  %117 = vmatpush2.msra.mxu0 0.0
  %118 = vmatprep.subr.mxu0 0.0
  %119 = vmatpush2.msra.mxu0 0.0
  %120 = vmatprep.subr.mxu0 0.0
  %121 = vmatpush2.msra.mxu0 0.0
  %122 = vmatprep.subr.mxu0 0.0
  %123 = vmatpush2.msra.mxu0 0.0
  %124 = vmatprep.subr.mxu0 0.0
  %125 = vmatpush2.msra.mxu0 0.0
  %126 = vmatprep.subr.mxu0 0.0
  %127 = vmatpush2.msra.mxu0 0.0
  %128 = vmatprep.subr.mxu0 0.0
  %129 = vmatpush2.msra.mxu0 0.0
  %130 = vmatprep.subr.mxu0 0.0
  %131 = vmatpush2.msra.mxu0 0.0
  %132 = vmatprep.subr.mxu0 0.0
  %133 = vmatpush2.msra.mxu0 0.0
  %134 = vmatprep.subr.mxu0 0.0
  %135 = vmatpush2.msra.mxu0 0.0
  %136 = vmatprep.subr.mxu0 0.0
  %137 = vmatpush2.msra.mxu0 0.0
  %138 = vmatprep.subr.mxu0 0.0
  %139 = vmatpush2.msra.mxu0 0.0
  %140 = vmatprep.subr.mxu0 0.0
  %141 = vmatpush2.msra.mxu0 0.0
  %142 = vmatprep.mubr.f32.mxu0 0.0
  %143 = vmatmul.mubr.f32.gmra.mxu0 %v51
  %v144 = vpop.f32.mrf.mxu0
  %v145 = vadd.f32 %v47, %v144
  %v146 = vpop.f32.mrf.mxu0
  %147 = vmatprep.mubr.f32.mxu0 0.0
  %148 = vmatmul.mubr.f32.gmra.mxu0 %v54
  %v149 = vpop.f32.mrf.mxu0
  %v150 = vadd.f32 %v47, %v149
  %v151 = vpop.f32.mrf.mxu0
  %152 = vmatprep.mubr.f32.mxu0 0.0
  %153 = vmatmul.mubr.f32.gmra.mxu0 %v57
  %v154 = vpop.f32.mrf.mxu0
  %v155 = vadd.f32 %v47, %v154
  %v156 = vpop.f32.mrf.mxu0
  %157 = vmatprep.mubr.f32.mxu0 0.0
  %158 = vmatmul.mubr.f32.gmra.mxu0 %v60
  %v159 = vpop.f32.mrf.mxu0
  %v160 = vadd.f32 %v47, %v159
  %v161 = vpop.f32.mrf.mxu0
  %162 = vmatprep.mubr.f32.mxu0 0.0
  %163 = vmatmul.mubr.f32.gmra.mxu0 %v63
  %v164 = vpop.f32.mrf.mxu0
  %v165 = vadd.f32 %v47, %v164
  %v166 = vpop.f32.mrf.mxu0
  %167 = vmatprep.mubr.f32.mxu0 0.0
  %168 = vmatmul.mubr.f32.gmra.mxu0 %v66
  %v169 = vpop.f32.mrf.mxu0
  %v170 = vadd.f32 %v47, %v169
  %v171 = vpop.f32.mrf.mxu0
  %172 = vmatprep.mubr.f32.mxu0 0.0
  %173 = vmatmul.mubr.f32.gmra.mxu0 %v69
  %v174 = vpop.f32.mrf.mxu0
  %v175 = vadd.f32 %v47, %v174
  %v176 = vpop.f32.mrf.mxu0
  %177 = vmatprep.mubr.f32.mxu0 0.0
  %178 = vmatmul.mubr.f32.gmra.mxu0 %v72
  %v179 = vpop.f32.mrf.mxu0
  %v180 = vadd.f32 %v47, %v179
  %v181 = vpop.f32.mrf.mxu0
  %182 = vdwg.mxu0
  %vm183 = vcmp.gt.f32.partialorder %v145, 0.0
  %vm184 = vcmp.gt.f32.partialorder %v150, 0.0
  %vm185 = vcmp.gt.f32.partialorder %v155, 0.0
  %vm186 = vcmp.gt.f32.partialorder %v160, 0.0
  %vm187 = vcmp.gt.f32.partialorder %v165, 0.0
  %vm188 = vcmp.gt.f32.partialorder %v170, 0.0
  %vm189 = vcmp.gt.f32.partialorder %v175, 0.0
  %vm190 = vcmp.gt.f32.partialorder %v180, 0.0
  %v191 = vmul.f32 %v145, 0.01
  %v192 = vmul.f32 %v150, 0.01
  %v193 = vmul.f32 %v155, 0.01
  %v194 = vmul.f32 %v160, 0.01
  %v195 = vmul.f32 %v165, 0.01
  %v196 = vmul.f32 %v170, 0.01
  %v197 = vmul.f32 %v175, 0.01
  %v198 = vmul.f32 %v180, 0.01
  %v199 = vsel %vm183, %v145, %v191
  %v200 = vsel %vm184, %v150, %v192
  %v201 = vsel %vm185, %v155, %v193
  %v202 = vsel %vm186, %v160, %v194
  %v203 = vsel %vm187, %v165, %v195
  %v204 = vsel %vm188, %v170, %v196
  %v205 = vsel %vm189, %v175, %v197
  %v206 = vsel %vm190, %v180, %v198
  %v207 = vld [vmem:[%s3] sm:$0xff]
  %v208 = vld [vmem:[%s3 + $0x8] sm:$0xff]
  %v209 = vld [vmem:[%s3 + $0x10] sm:$0xff]
  %v210 = vld [vmem:[%s3 + $0x18] sm:$0xff]
  %v211 = vld [vmem:[%s4] sm:$0x1]
  %v213 = vlaneseq
  %v214 = vshrl.u32 %v213, 7
  %v215 = vsub.s32 0, %v214
  %v216 = vrot.slane %v211, %v215
  %vm218 = vcmask 261120
  %v220 = vsel %vm218, %v199, 0
  %v223 = vsel %vm218, %v200, 0
  %v226 = vsel %vm218, %v201, 0
  %v229 = vsel %vm218, %v202, 0
  %v232 = vsel %vm218, %v203, 0
  %v235 = vsel %vm218, %v204, 0
  %v238 = vsel %vm218, %v205, 0
  %v241 = vsel %vm218, %v206, 0
  %243 = vmatprep.subr.mxu0 0.0
  %244 = vmatpush1.msra.mxu0 0.0
  %245 = vmatprep.subr.mxu0 0.0
  %246 = vmatpush1.msra.mxu0 0.0
  %247 = vmatprep.subr.mxu0 0.0
  %248 = vmatpush1.msra.mxu0 0.0
  %249 = vmatprep.subr.mxu0 0.0
  %250 = vmatpush1.msra.mxu0 0.0
  %251 = vmatprep.subr.mxu0 0.0
  %252 = vmatpush1.msra.mxu0 0.0
  %253 = vmatprep.subr.mxu0 0.0
  %254 = vmatpush1.msra.mxu0 0.0
  %255 = vmatprep.subr.mxu0 0.0
  %256 = vmatpush1.msra.mxu0 0.0
  %257 = vmatprep.subr.mxu0 0.0
  %258 = vmatpush1.msra.mxu0 0.0
  %259 = vmatprep.subr.mxu0 0.0
  %260 = vmatpush1.msra.mxu0 0.0
  %261 = vmatprep.subr.mxu0 0.0
  %262 = vmatpush1.msra.mxu0 0.0
  %263 = vmatprep.subr.mxu0 0.0
  %264 = vmatpush1.msra.mxu0 0.0
  %265 = vmatprep.subr.mxu0 0.0
  %266 = vmatpush1.msra.mxu0 0.0
  %267 = vmatprep.subr.mxu0 0.0
  %268 = vmatpush1.msra.mxu0 %v210
  %269 = vmatprep.subr.mxu0 0.0
  %270 = vmatpush1.msra.mxu0 %v209
  %271 = vmatprep.subr.mxu0 0.0
  %272 = vmatpush1.msra.mxu0 %v208
  %273 = vmatprep.subr.mxu0 0.0
  %274 = vmatpush1.msra.mxu0 %v207
  %275 = vmatprep.subr.mxu0 0.0
  %276 = vmatpush2.msra.mxu0 0.0
  %277 = vmatprep.subr.mxu0 0.0
  %278 = vmatpush2.msra.mxu0 0.0
  %279 = vmatprep.subr.mxu0 0.0
  %280 = vmatpush2.msra.mxu0 0.0
  %281 = vmatprep.subr.mxu0 0.0
  %282 = vmatpush2.msra.mxu0 0.0
  %283 = vmatprep.subr.mxu0 0.0
  %284 = vmatpush2.msra.mxu0 0.0
  %285 = vmatprep.subr.mxu0 0.0
  %286 = vmatpush2.msra.mxu0 0.0
  %287 = vmatprep.subr.mxu0 0.0
  %288 = vmatpush2.msra.mxu0 0.0
  %289 = vmatprep.subr.mxu0 0.0
  %290 = vmatpush2.msra.mxu0 0.0
  %291 = vmatprep.subr.mxu0 0.0
  %292 = vmatpush2.msra.mxu0 0.0
  %293 = vmatprep.subr.mxu0 0.0
  %294 = vmatpush2.msra.mxu0 0.0
  %295 = vmatprep.subr.mxu0 0.0
  %296 = vmatpush2.msra.mxu0 0.0
  %297 = vmatprep.subr.mxu0 0.0
  %298 = vmatpush2.msra.mxu0 0.0
  %299 = vmatprep.subr.mxu0 0.0
  %300 = vmatpush2.msra.mxu0 0.0
  %301 = vmatprep.subr.mxu0 0.0
  %302 = vmatpush2.msra.mxu0 0.0
  %303 = vmatprep.subr.mxu0 0.0
  %304 = vmatpush2.msra.mxu0 0.0
  %305 = vmatprep.subr.mxu0 0.0
  %306 = vmatpush2.msra.mxu0 0.0
  %307 = vmatprep.mubr.f32.mxu0 0.0
  %308 = vmatmul.mubr.f32.gmra.mxu0 %v220
  %v309 = vpop.f32.mrf.mxu0
  %v310 = vadd.f32 %v216, %v309
  %v311 = vpop.f32.mrf.mxu0
  %312 = vmatprep.mubr.f32.mxu0 0.0
  %313 = vmatmul.mubr.f32.gmra.mxu0 %v223
  %v314 = vpop.f32.mrf.mxu0
  %v315 = vadd.f32 %v216, %v314
  %v316 = vpop.f32.mrf.mxu0
  %317 = vmatprep.mubr.f32.mxu0 0.0
  %318 = vmatmul.mubr.f32.gmra.mxu0 %v226
  %v319 = vpop.f32.mrf.mxu0
  %v320 = vadd.f32 %v216, %v319
  %v321 = vpop.f32.mrf.mxu0
  %322 = vmatprep.mubr.f32.mxu0 0.0
  %323 = vmatmul.mubr.f32.gmra.mxu0 %v229
  %v324 = vpop.f32.mrf.mxu0
  %v325 = vadd.f32 %v216, %v324
  %v326 = vpop.f32.mrf.mxu0
  %327 = vmatprep.mubr.f32.mxu0 0.0
  %328 = vmatmul.mubr.f32.gmra.mxu0 %v232
  %v329 = vpop.f32.mrf.mxu0
  %v330 = vadd.f32 %v216, %v329
  %v331 = vpop.f32.mrf.mxu0
  %332 = vmatprep.mubr.f32.mxu0 0.0
  %333 = vmatmul.mubr.f32.gmra.mxu0 %v235
  %v334 = vpop.f32.mrf.mxu0
  %v335 = vadd.f32 %v216, %v334
  %v336 = vpop.f32.mrf.mxu0
  %337 = vmatprep.mubr.f32.mxu0 0.0
  %338 = vmatmul.mubr.f32.gmra.mxu0 %v238
  %v339 = vpop.f32.mrf.mxu0
  %v340 = vadd.f32 %v216, %v339
  %v341 = vpop.f32.mrf.mxu0
  %342 = vmatprep.mubr.f32.mxu0 0.0
  %343 = vmatmul.mubr.f32.gmra.mxu0 %v241
  %v344 = vpop.f32.mrf.mxu0
  %v345 = vadd.f32 %v216, %v344
  %v346 = vpop.f32.mrf.mxu0
  %347 = vdwg.mxu0
  %vm348 = vcmp.gt.f32.partialorder %v310, 0.0
  %vm349 = vcmp.gt.f32.partialorder %v315, 0.0
  %vm350 = vcmp.gt.f32.partialorder %v320, 0.0
  %vm351 = vcmp.gt.f32.partialorder %v325, 0.0
  %vm352 = vcmp.gt.f32.partialorder %v330, 0.0
  %vm353 = vcmp.gt.f32.partialorder %v335, 0.0
  %vm354 = vcmp.gt.f32.partialorder %v340, 0.0
  %vm355 = vcmp.gt.f32.partialorder %v345, 0.0
  %v356 = vmul.f32 %v310, 0.01
  %v357 = vmul.f32 %v315, 0.01
  %v358 = vmul.f32 %v320, 0.01
  %v359 = vmul.f32 %v325, 0.01
  %v360 = vmul.f32 %v330, 0.01
  %v361 = vmul.f32 %v335, 0.01
  %v362 = vmul.f32 %v340, 0.01
  %v363 = vmul.f32 %v345, 0.01
  %v364 = vsel %vm348, %v310, %v356
  %v365 = vsel %vm349, %v315, %v357
  %v366 = vsel %vm350, %v320, %v358
  %v367 = vsel %vm351, %v325, %v359
  %v368 = vsel %vm352, %v330, %v360
  %v369 = vsel %vm353, %v335, %v361
  %v370 = vsel %vm354, %v340, %v362
  %v371 = vsel %vm355, %v345, %v363
  %v372 = vld [vmem:[%s5] sm:$0xff]
  %v373 = vld [vmem:[%s5 + $0x8] sm:$0xff]
  %v374 = vld [vmem:[%s5 + $0x10] sm:$0xff]
  %v375 = vld [vmem:[%s5 + $0x18] sm:$0xff]
  %v376 = vld [vmem:[%s6] sm:$0x1]
  %v378 = vlaneseq
  %v379 = vshrl.u32 %v378, 7
  %v380 = vsub.s32 0, %v379
  %v381 = vrot.slane %v376, %v380
  %v384 = vsel %vm218, %v364, 0
  %v387 = vsel %vm218, %v365, 0
  %v390 = vsel %vm218, %v366, 0
  %v393 = vsel %vm218, %v367, 0
  %v396 = vsel %vm218, %v368, 0
  %v399 = vsel %vm218, %v369, 0
  %v402 = vsel %vm218, %v370, 0
  %v405 = vsel %vm218, %v371, 0
  %407 = vmatprep.subr.mxu0 0.0
  %408 = vmatpush1.msra.mxu0 0.0
  %409 = vmatprep.subr.mxu0 0.0
  %410 = vmatpush1.msra.mxu0 0.0
  %411 = vmatprep.subr.mxu0 0.0
  %412 = vmatpush1.msra.mxu0 0.0
  %413 = vmatprep.subr.mxu0 0.0
  %414 = vmatpush1.msra.mxu0 0.0
  %415 = vmatprep.subr.mxu0 0.0
  %416 = vmatpush1.msra.mxu0 0.0
  %417 = vmatprep.subr.mxu0 0.0
  %418 = vmatpush1.msra.mxu0 0.0
  %419 = vmatprep.subr.mxu0 0.0
  %420 = vmatpush1.msra.mxu0 0.0
  %421 = vmatprep.subr.mxu0 0.0
  %422 = vmatpush1.msra.mxu0 0.0
  %423 = vmatprep.subr.mxu0 0.0
  %424 = vmatpush1.msra.mxu0 0.0
  %425 = vmatprep.subr.mxu0 0.0
  %426 = vmatpush1.msra.mxu0 0.0
  %427 = vmatprep.subr.mxu0 0.0
  %428 = vmatpush1.msra.mxu0 0.0
  %429 = vmatprep.subr.mxu0 0.0
  %430 = vmatpush1.msra.mxu0 0.0
  %431 = vmatprep.subr.mxu0 0.0
  %432 = vmatpush1.msra.mxu0 %v375
  %433 = vmatprep.subr.mxu0 0.0
  %434 = vmatpush1.msra.mxu0 %v374
  %435 = vmatprep.subr.mxu0 0.0
  %436 = vmatpush1.msra.mxu0 %v373
  %437 = vmatprep.subr.mxu0 0.0
  %438 = vmatpush1.msra.mxu0 %v372
  %439 = vmatprep.subr.mxu0 0.0
  %440 = vmatpush2.msra.mxu0 0.0
  %441 = vmatprep.subr.mxu0 0.0
  %442 = vmatpush2.msra.mxu0 0.0
  %443 = vmatprep.subr.mxu0 0.0
  %444 = vmatpush2.msra.mxu0 0.0
  %445 = vmatprep.subr.mxu0 0.0
  %446 = vmatpush2.msra.mxu0 0.0
  %447 = vmatprep.subr.mxu0 0.0
  %448 = vmatpush2.msra.mxu0 0.0
  %449 = vmatprep.subr.mxu0 0.0
  %450 = vmatpush2.msra.mxu0 0.0
  %451 = vmatprep.subr.mxu0 0.0
  %452 = vmatpush2.msra.mxu0 0.0
  %453 = vmatprep.subr.mxu0 0.0
  %454 = vmatpush2.msra.mxu0 0.0
  %455 = vmatprep.subr.mxu0 0.0
  %456 = vmatpush2.msra.mxu0 0.0
  %457 = vmatprep.subr.mxu0 0.0
  %458 = vmatpush2.msra.mxu0 0.0
  %459 = vmatprep.subr.mxu0 0.0
  %460 = vmatpush2.msra.mxu0 0.0
  %461 = vmatprep.subr.mxu0 0.0
  %462 = vmatpush2.msra.mxu0 0.0
  %463 = vmatprep.subr.mxu0 0.0
  %464 = vmatpush2.msra.mxu0 0.0
  %465 = vmatprep.subr.mxu0 0.0
  %466 = vmatpush2.msra.mxu0 0.0
  %467 = vmatprep.subr.mxu0 0.0
  %468 = vmatpush2.msra.mxu0 0.0
  %469 = vmatprep.subr.mxu0 0.0
  %470 = vmatpush2.msra.mxu0 0.0
  %471 = vmatprep.mubr.f32.mxu0 0.0
  %472 = vmatmul.mubr.f32.gmra.mxu0 %v384
  %v473 = vpop.f32.mrf.mxu0
  %v474 = vadd.f32 %v381, %v473
  %v475 = vpop.f32.mrf.mxu0
  %476 = vmatprep.mubr.f32.mxu0 0.0
  %477 = vmatmul.mubr.f32.gmra.mxu0 %v387
  %v478 = vpop.f32.mrf.mxu0
  %v479 = vadd.f32 %v381, %v478
  %v480 = vpop.f32.mrf.mxu0
  %481 = vmatprep.mubr.f32.mxu0 0.0
  %482 = vmatmul.mubr.f32.gmra.mxu0 %v390
  %v483 = vpop.f32.mrf.mxu0
  %v484 = vadd.f32 %v381, %v483
  %v485 = vpop.f32.mrf.mxu0
  %486 = vmatprep.mubr.f32.mxu0 0.0
  %487 = vmatmul.mubr.f32.gmra.mxu0 %v393
  %v488 = vpop.f32.mrf.mxu0
  %v489 = vadd.f32 %v381, %v488
  %v490 = vpop.f32.mrf.mxu0
  %491 = vmatprep.mubr.f32.mxu0 0.0
  %492 = vmatmul.mubr.f32.gmra.mxu0 %v396
  %v493 = vpop.f32.mrf.mxu0
  %v494 = vadd.f32 %v381, %v493
  %v495 = vpop.f32.mrf.mxu0
  %496 = vmatprep.mubr.f32.mxu0 0.0
  %497 = vmatmul.mubr.f32.gmra.mxu0 %v399
  %v498 = vpop.f32.mrf.mxu0
  %v499 = vadd.f32 %v381, %v498
  %v500 = vpop.f32.mrf.mxu0
  %501 = vmatprep.mubr.f32.mxu0 0.0
  %502 = vmatmul.mubr.f32.gmra.mxu0 %v402
  %v503 = vpop.f32.mrf.mxu0
  %v504 = vadd.f32 %v381, %v503
  %v505 = vpop.f32.mrf.mxu0
  %506 = vmatprep.mubr.f32.mxu0 0.0
  %507 = vmatmul.mubr.f32.gmra.mxu0 %v405
  %v508 = vpop.f32.mrf.mxu0
  %v509 = vadd.f32 %v381, %v508
  %v510 = vpop.f32.mrf.mxu0
  %511 = vdwg.mxu0
  %v512 = vlaneseq
  %v513 = vand.u32 %v512, 127
  %vm514 = vcmp.lt.s32.totalorder %v513, 5
  %v515 = vsel %vm514, 1, 0
  %vm516 = vcmp.eq.s32.totalorder %v515, 1
  %v517 = vsel %vm516, %v474, -inf
  %v518 = vsel %vm516, %v479, -inf
  %v519 = vsel %vm516, %v484, -inf
  %v520 = vsel %vm516, %v489, -inf
  %v521 = vsel %vm516, %v494, -inf
  %v522 = vsel %vm516, %v499, -inf
  %v523 = vsel %vm516, %v504, -inf
  %v524 = vsel %vm516, %v509, -inf
  %525 = vmax.xlane.f32.xlu0 %v517
  %v526 = vpop.xlane.xlu0 %525
  %527 = vmax.xlane.f32.xlu0 %v518
  %v528 = vpop.xlane.xlu0 %527
  %529 = vmax.xlane.f32.xlu0 %v519
  %v530 = vpop.xlane.xlu0 %529
  %531 = vmax.xlane.f32.xlu0 %v520
  %v532 = vpop.xlane.xlu0 %531
  %533 = vmax.xlane.f32.xlu0 %v521
  %v534 = vpop.xlane.xlu0 %533
  %535 = vmax.xlane.f32.xlu0 %v522
  %v536 = vpop.xlane.xlu0 %535
  %537 = vmax.xlane.f32.xlu0 %v523
  %v538 = vpop.xlane.xlu0 %537
  %539 = vmax.xlane.f32.xlu0 %v524
  %v540 = vpop.xlane.xlu0 %539
  %v541 = vsub.f32 %v517, %v526
  %v542 = vsub.f32 %v518, %v528
  %v543 = vsub.f32 %v519, %v530
  %v544 = vsub.f32 %v520, %v532
  %v545 = vsub.f32 %v521, %v534
  %v546 = vsub.f32 %v522, %v536
  %v547 = vsub.f32 %v523, %v538
  %v548 = vsub.f32 %v524, %v540
  %v549 = vmul.f32 %v541, 1.442695
  %v550 = vpow.pop %v549
  %v551 = vmul.f32 %v542, 1.442695
  %v552 = vpow.pop %v551
  %v553 = vmul.f32 %v543, 1.442695
  %v554 = vpow.pop %v553
  %v555 = vmul.f32 %v544, 1.442695
  %v556 = vpow.pop %v555
  %v557 = vmul.f32 %v545, 1.442695
  %v558 = vpow.pop %v557
  %v559 = vmul.f32 %v546, 1.442695
  %v560 = vpow.pop %v559
  %v561 = vmul.f32 %v547, 1.442695
  %v562 = vpow.pop %v561
  %v563 = vmul.f32 %v548, 1.442695
  %v564 = vpow.pop %v563
  %565 = vadd.xlane.f32.xlu0 %v550
  %v566 = vpop.xlane.xlu0 %565
  %567 = vadd.xlane.f32.xlu0 %v552
  %v568 = vpop.xlane.xlu0 %567
  %569 = vadd.xlane.f32.xlu0 %v554
  %v570 = vpop.xlane.xlu0 %569
  %571 = vadd.xlane.f32.xlu0 %v556
  %v572 = vpop.xlane.xlu0 %571
  %573 = vadd.xlane.f32.xlu0 %v558
  %v574 = vpop.xlane.xlu0 %573
  %575 = vadd.xlane.f32.xlu0 %v560
  %v576 = vpop.xlane.xlu0 %575
  %577 = vadd.xlane.f32.xlu0 %v562
  %v578 = vpop.xlane.xlu0 %577
  %579 = vadd.xlane.f32.xlu0 %v564
  %v580 = vpop.xlane.xlu0 %579
  %v581 = vrcp.pop %v566
  %v582 = vrcp.pop %v568
  %v583 = vrcp.pop %v570
  %v584 = vrcp.pop %v572
  %v585 = vrcp.pop %v574
  %v586 = vrcp.pop %v576
  %v587 = vrcp.pop %v578
  %v588 = vrcp.pop %v580
  %v589 = vmul.f32 %v550, %v581
  %v590 = vmul.f32 %v552, %v582
  %v591 = vmul.f32 %v554, %v583
  %v592 = vmul.f32 %v556, %v584
  %v593 = vmul.f32 %v558, %v585
  %v594 = vmul.f32 %v560, %v586
  %v595 = vmul.f32 %v562, %v587
  %v596 = vmul.f32 %v564, %v588
  %v597 = vcvt.f32.s32.to.zero.pseudo %v29
  %v598 = vcvt.f32.s32.to.zero.pseudo %v30
  %v599 = vcvt.f32.s32.to.zero.pseudo %v31
  %v600 = vcvt.f32.s32.to.zero.pseudo %v32
  %v601 = vcvt.f32.s32.to.zero.pseudo %v33
  %v602 = vcvt.f32.s32.to.zero.pseudo %v34
  %v603 = vcvt.f32.s32.to.zero.pseudo %v35
  %v604 = vcvt.f32.s32.to.zero.pseudo %v36
  %605 = vset.pattern.permute.xlu0 32
  %606 = vperm.xlu0 %605, %v597
  %v607 = vpop.permute.xlu0 %606
  %608 = vset.pattern.permute.xlu0 32
  %609 = vperm.xlu0 %608, %v598
  %v610 = vpop.permute.xlu0 %609
  %611 = vset.pattern.permute.xlu0 32
  %612 = vperm.xlu0 %611, %v599
  %v613 = vpop.permute.xlu0 %612
  %614 = vset.pattern.permute.xlu0 32
  %615 = vperm.xlu0 %614, %v600
  %v616 = vpop.permute.xlu0 %615
  %617 = vset.pattern.permute.xlu0 32
  %618 = vperm.xlu0 %617, %v601
  %v619 = vpop.permute.xlu0 %618
  %620 = vset.pattern.permute.xlu0 32
  %621 = vperm.xlu0 %620, %v602
  %v622 = vpop.permute.xlu0 %621
  %623 = vset.pattern.permute.xlu0 32
  %624 = vperm.xlu0 %623, %v603
  %v625 = vpop.permute.xlu0 %624
  %626 = vset.pattern.permute.xlu0 32
  %627 = vperm.xlu0 %626, %v604
  %v628 = vpop.permute.xlu0 %627
  %vm629 = vcmp.eq.s32.totalorder %v513, %v607
  %vm630 = vcmp.eq.s32.totalorder %v513, %v610
  %vm631 = vcmp.eq.s32.totalorder %v513, %v613
  %vm632 = vcmp.eq.s32.totalorder %v513, %v616
  %vm633 = vcmp.eq.s32.totalorder %v513, %v619
  %vm634 = vcmp.eq.s32.totalorder %v513, %v622
  %vm635 = vcmp.eq.s32.totalorder %v513, %v625
  %vm636 = vcmp.eq.s32.totalorder %v513, %v628
  %v637 = vsel %vm629, 1, 0
  %v638 = vsel %vm630, 1, 0
  %v639 = vsel %vm631, 1, 0
  %v640 = vsel %vm632, 1, 0
  %v641 = vsel %vm633, 1, 0
  %v642 = vsel %vm634, 1, 0
  %v643 = vsel %vm635, 1, 0
  %v644 = vsel %vm636, 1, 0
  %v645 = vcvt.s32.f32 %v637
  %v646 = vcvt.s32.f32 %v638
  %v647 = vcvt.s32.f32 %v639
  %v648 = vcvt.s32.f32 %v640
  %v649 = vcvt.s32.f32 %v641
  %v650 = vcvt.s32.f32 %v642
  %v651 = vcvt.s32.f32 %v643
  %v652 = vcvt.s32.f32 %v644
  %v653 = vld [vmem:[%s7] sm:$0xff]
  %vm654 = vcmask 64512
  %v656 = vsel %vm654, %v645, 0
  %v659 = vsel %vm654, %v646, 0
  %v662 = vsel %vm654, %v647, 0
  %v665 = vsel %vm654, %v648, 0
  %v668 = vsel %vm654, %v649, 0
  %v671 = vsel %vm654, %v650, 0
  %v674 = vsel %vm654, %v651, 0
  %v677 = vsel %vm654, %v652, 0
  %679 = vmatprep.subr.mxu0 0.0
  %680 = vmatpush1.msra.mxu0 0.0
  %681 = vmatprep.subr.mxu0 0.0
  %682 = vmatpush1.msra.mxu0 0.0
  %683 = vmatprep.subr.mxu0 0.0
  %684 = vmatpush1.msra.mxu0 0.0
  %685 = vmatprep.subr.mxu0 0.0
  %686 = vmatpush1.msra.mxu0 0.0
  %687 = vmatprep.subr.mxu0 0.0
  %688 = vmatpush1.msra.mxu0 0.0
  %689 = vmatprep.subr.mxu0 0.0
  %690 = vmatpush1.msra.mxu0 0.0
  %691 = vmatprep.subr.mxu0 0.0
  %692 = vmatpush1.msra.mxu0 0.0
  %693 = vmatprep.subr.mxu0 0.0
  %694 = vmatpush1.msra.mxu0 0.0
  %695 = vmatprep.subr.mxu0 0.0
  %696 = vmatpush1.msra.mxu0 0.0
  %697 = vmatprep.subr.mxu0 0.0
  %698 = vmatpush1.msra.mxu0 0.0
  %699 = vmatprep.subr.mxu0 0.0
  %700 = vmatpush1.msra.mxu0 0.0
  %701 = vmatprep.subr.mxu0 0.0
  %702 = vmatpush1.msra.mxu0 0.0
  %703 = vmatprep.subr.mxu0 0.0
  %704 = vmatpush1.msra.mxu0 0.0
  %705 = vmatprep.subr.mxu0 0.0
  %706 = vmatpush1.msra.mxu0 0.0
  %707 = vmatprep.subr.mxu0 0.0
  %708 = vmatpush1.msra.mxu0 0.0
  %709 = vmatprep.subr.mxu0 0.0
  %710 = vmatpush1.msra.mxu0 %v653
  %711 = vmatprep.subr.mxu0 0.0
  %712 = vmatpush2.msra.mxu0 0.0
  %713 = vmatprep.subr.mxu0 0.0
  %714 = vmatpush2.msra.mxu0 0.0
  %715 = vmatprep.subr.mxu0 0.0
  %716 = vmatpush2.msra.mxu0 0.0
  %717 = vmatprep.subr.mxu0 0.0
  %718 = vmatpush2.msra.mxu0 0.0
  %719 = vmatprep.subr.mxu0 0.0
  %720 = vmatpush2.msra.mxu0 0.0
  %721 = vmatprep.subr.mxu0 0.0
  %722 = vmatpush2.msra.mxu0 0.0
  %723 = vmatprep.subr.mxu0 0.0
  %724 = vmatpush2.msra.mxu0 0.0
  %725 = vmatprep.subr.mxu0 0.0
  %726 = vmatpush2.msra.mxu0 0.0
  %727 = vmatprep.subr.mxu0 0.0
  %728 = vmatpush2.msra.mxu0 0.0
  %729 = vmatprep.subr.mxu0 0.0
  %730 = vmatpush2.msra.mxu0 0.0
  %731 = vmatprep.subr.mxu0 0.0
  %732 = vmatpush2.msra.mxu0 0.0
  %733 = vmatprep.subr.mxu0 0.0
  %734 = vmatpush2.msra.mxu0 0.0
  %735 = vmatprep.subr.mxu0 0.0
  %736 = vmatpush2.msra.mxu0 0.0
  %737 = vmatprep.subr.mxu0 0.0
  %738 = vmatpush2.msra.mxu0 0.0
  %739 = vmatprep.subr.mxu0 0.0
  %740 = vmatpush2.msra.mxu0 0.0
  %741 = vmatprep.subr.mxu0 0.0
  %742 = vmatpush2.msra.mxu0 0.0
  %743 = vmatprep.mubr.f32.mxu0 0.0
  %744 = vmatmul.mubr.f32.gmra.mxu0 %v656
  %v745 = vpop.f32.mrf.mxu0
  %v746 = vadd.f32 0.0, %v745
  %v747 = vpop.f32.mrf.mxu0
  %748 = vmatprep.mubr.f32.mxu0 0.0
  %749 = vmatmul.mubr.f32.gmra.mxu0 %v659
  %v750 = vpop.f32.mrf.mxu0
  %v751 = vadd.f32 0.0, %v750
  %v752 = vpop.f32.mrf.mxu0
  %753 = vmatprep.mubr.f32.mxu0 0.0
  %754 = vmatmul.mubr.f32.gmra.mxu0 %v662
  %v755 = vpop.f32.mrf.mxu0
  %v756 = vadd.f32 0.0, %v755
  %v757 = vpop.f32.mrf.mxu0
  %758 = vmatprep.mubr.f32.mxu0 0.0
  %759 = vmatmul.mubr.f32.gmra.mxu0 %v665
  %v760 = vpop.f32.mrf.mxu0
  %v761 = vadd.f32 0.0, %v760
  %v762 = vpop.f32.mrf.mxu0
  %763 = vmatprep.mubr.f32.mxu0 0.0
  %764 = vmatmul.mubr.f32.gmra.mxu0 %v668
  %v765 = vpop.f32.mrf.mxu0
  %v766 = vadd.f32 0.0, %v765
  %v767 = vpop.f32.mrf.mxu0
  %768 = vmatprep.mubr.f32.mxu0 0.0
  %769 = vmatmul.mubr.f32.gmra.mxu0 %v671
  %v770 = vpop.f32.mrf.mxu0
  %v771 = vadd.f32 0.0, %v770
  %v772 = vpop.f32.mrf.mxu0
  %773 = vmatprep.mubr.f32.mxu0 0.0
  %774 = vmatmul.mubr.f32.gmra.mxu0 %v674
  %v775 = vpop.f32.mrf.mxu0
  %v776 = vadd.f32 0.0, %v775
  %v777 = vpop.f32.mrf.mxu0
  %778 = vmatprep.mubr.f32.mxu0 0.0
  %779 = vmatmul.mubr.f32.gmra.mxu0 %v677
  %v780 = vpop.f32.mrf.mxu0
  %v781 = vadd.f32 0.0, %v780
  %v782 = vpop.f32.mrf.mxu0
  %783 = vdwg.mxu0
  %v784 = vadd.f32 %v589, %v746
  %v785 = vadd.f32 %v590, %v751
  %v786 = vadd.f32 %v591, %v756
  %v787 = vadd.f32 %v592, %v761
  %v788 = vadd.f32 %v593, %v766
  %v789 = vadd.f32 %v594, %v771
  %v790 = vadd.f32 %v595, %v776
  %v791 = vadd.f32 %v596, %v781
  %v792 = vsel %vm516, %v784, -inf
  %v793 = vsel %vm516, %v785, -inf
  %v794 = vsel %vm516, %v786, -inf
  %v795 = vsel %vm516, %v787, -inf
  %v796 = vsel %vm516, %v788, -inf
  %v797 = vsel %vm516, %v789, -inf
  %v798 = vsel %vm516, %v790, -inf
  %v799 = vsel %vm516, %v791, -inf
  %800 = vmax.xlane.f32.xlu0 %v792
  %v801 = vpop.xlane.xlu0 %800
  %802 = vmax.xlane.f32.xlu0 %v793
  %v803 = vpop.xlane.xlu0 %802
  %804 = vmax.xlane.f32.xlu0 %v794
  %v805 = vpop.xlane.xlu0 %804
  %806 = vmax.xlane.f32.xlu0 %v795
  %v807 = vpop.xlane.xlu0 %806
  %808 = vmax.xlane.f32.xlu0 %v796
  %v809 = vpop.xlane.xlu0 %808
  %810 = vmax.xlane.f32.xlu0 %v797
  %v811 = vpop.xlane.xlu0 %810
  %812 = vmax.xlane.f32.xlu0 %v798
  %v813 = vpop.xlane.xlu0 %812
  %814 = vmax.xlane.f32.xlu0 %v799
  %v815 = vpop.xlane.xlu0 %814
  %v816 = vsub.f32 %v792, %v801
  %v817 = vsub.f32 %v793, %v803
  %v818 = vsub.f32 %v794, %v805
  %v819 = vsub.f32 %v795, %v807
  %v820 = vsub.f32 %v796, %v809
  %v821 = vsub.f32 %v797, %v811
  %v822 = vsub.f32 %v798, %v813
  %v823 = vsub.f32 %v799, %v815
  %v824 = vmul.f32 %v816, 1.442695
  %v825 = vpow.pop %v824
  %v826 = vmul.f32 %v817, 1.442695
  %v827 = vpow.pop %v826
  %v828 = vmul.f32 %v818, 1.442695
  %v829 = vpow.pop %v828
  %v830 = vmul.f32 %v819, 1.442695
  %v831 = vpow.pop %v830
  %v832 = vmul.f32 %v820, 1.442695
  %v833 = vpow.pop %v832
  %v834 = vmul.f32 %v821, 1.442695
  %v835 = vpow.pop %v834
  %v836 = vmul.f32 %v822, 1.442695
  %v837 = vpow.pop %v836
  %v838 = vmul.f32 %v823, 1.442695
  %v839 = vpow.pop %v838
  %840 = vadd.xlane.f32.xlu0 %v825
  %v841 = vpop.xlane.xlu0 %840
  %842 = vadd.xlane.f32.xlu0 %v827
  %v843 = vpop.xlane.xlu0 %842
  %844 = vadd.xlane.f32.xlu0 %v829
  %v845 = vpop.xlane.xlu0 %844
  %846 = vadd.xlane.f32.xlu0 %v831
  %v847 = vpop.xlane.xlu0 %846
  %848 = vadd.xlane.f32.xlu0 %v833
  %v849 = vpop.xlane.xlu0 %848
  %850 = vadd.xlane.f32.xlu0 %v835
  %v851 = vpop.xlane.xlu0 %850
  %852 = vadd.xlane.f32.xlu0 %v837
  %v853 = vpop.xlane.xlu0 %852
  %854 = vadd.xlane.f32.xlu0 %v839
  %v855 = vpop.xlane.xlu0 %854
  %v856 = vrcp.pop %v841
  %v857 = vmul.f32 %v825, %v856
  %v858 = vrcp.pop %v843
  %v859 = vmul.f32 %v827, %v858
  %v860 = vrcp.pop %v845
  %v861 = vmul.f32 %v829, %v860
  %v862 = vrcp.pop %v847
  %v863 = vmul.f32 %v831, %v862
  %v864 = vrcp.pop %v849
  %v865 = vmul.f32 %v833, %v864
  %v866 = vrcp.pop %v851
  %v867 = vmul.f32 %v835, %v866
  %v868 = vrcp.pop %v853
  %v869 = vmul.f32 %v837, %v868
  %v870 = vrcp.pop %v855
  %v871 = vmul.f32 %v839, %v870
  %vm872 = vcmask 39936
  %873 = vst.msk [vmem:[%s8] sm:$0xff] %vm872, %v857
  %874 = vst.msk [vmem:[%s8 + $0x8] sm:$0xff] %vm872, %v859
  %875 = vst.msk [vmem:[%s8 + $0x10] sm:$0xff] %vm872, %v861
  %876 = vst.msk [vmem:[%s8 + $0x18] sm:$0xff] %vm872, %v863
  %877 = vst.msk [vmem:[%s8 + $0x20] sm:$0xff] %vm872, %v865
  %878 = vst.msk [vmem:[%s8 + $0x28] sm:$0xff] %vm872, %v867
  %879 = vst.msk [vmem:[%s8 + $0x30] sm:$0xff] %vm872, %v869
  %880 = vst.msk [vmem:[%s8 + $0x38] sm:$0xff] %vm872, %v871
  // Predicated region
  $region34: #{tpu_custom_call.1} parent=0 // pred_check
    _
  $region35: #{tpu_custom_call.1} parent=0 // pred_check_branch
    %882 = sbr.rel (0) target = $region37
  $region36: #{tpu_custom_call.1} parent=0 // pred_region
    _
  $region37: #{tpu_custom_call.1} parent=0 // pred_fallthru
    _
  // Predicated region
  $region38: #{tpu_custom_call.1} parent=0 // pred_check
    _
  $region39: #{tpu_custom_call.1} parent=0 // pred_check_branch
    %884 = sbr.rel (0) target = $region41
  $region40: #{tpu_custom_call.1} parent=0 // pred_region
    _
  $region41: #{tpu_custom_call.1} parent=0 // pred_fallthru
    _

</llo_original>
